<compile_context>
chip_gen: v6e
topology: v6e:2x2x1
jax: 0.10.0
libtpu: 0.0.40
codegen_flags: <defaults>
</compile_context>

<pallas_src>
import functools

import jax
import jax.numpy as jnp
from jax.experimental import pallas as pl
from jax.experimental.pallas import tpu as pltpu

LANES = 128                 # TPU vreg lane width
MAX_TILE_ROWS = 8192        # 8192 * 128 * 4B = 4 MiB per f32 input tile
MIN_ROWS_FOR_SPLIT = 2048   # >=1 MiB per input -> worth using both v7x TCs


def _cdiv(a, b):
    return (a + b - 1) // b


def _round_up(a, m):
    return _cdiv(a, m) * m


def _my_loss_kernel(x_ref, de1_ref, s_ref, de2_ref, ed1_ref, ed2_ref, out_ref,
                    *, tile_rows, valid_rows, inv_n1, inv_n2, inv_n3, need_mask):
    i = pl.program_id(0)

    # ---- hot path: squared-diff partial of the big pair for this row tile ----
    d = x_ref[...].astype(jnp.float32) - de1_ref[...].astype(jnp.float32)
    if need_mask:
        # Last grid tile may extend past the real rows; OOB rows are garbage,
        # so zero them before squaring (select, so NaN garbage can't leak).
        row = jax.lax.broadcasted_iota(jnp.int32, d.shape, 0) + i * tile_rows
        d = jnp.where(row < valid_rows, d, 0.0)
    part = jnp.sum(d * d, axis=0, keepdims=True) * inv_n1          # (1, 128)

    rows8 = jax.lax.broadcasted_iota(jnp.int32, out_ref.shape, 0)   # (8, 128)

    @pl.when(i == 0)
    def _():
        # Small pairs, handled exactly once (step 0 runs on exactly one core
        # under megacore sharding).  Tiny VPU/XLU work, off the hot path.
        ds = s_ref[...].astype(jnp.float32) - de2_ref[...].astype(jnp.float32)
        de = ed1_ref[...].astype(jnp.float32) - ed2_ref[...].astype(jnp.float32)
        small = jnp.sum(ds * ds) * inv_n2 + jnp.sum(de * de) * inv_n3
        lane = jax.lax.broadcasted_iota(jnp.int32, part.shape, 1)
        row0 = part + jnp.where(lane == 0, small, 0.0)
        out_ref[...] = jnp.where(rows8 == 0, row0, 0.0)

    @pl.when(i != 0)
    def _():
        out_ref[...] = jnp.where(rows8 == 0, part, 0.0)


def _to_rows(a):
    """Lane-dense (rows, 128) view of `a`.  Pure (no-copy) reshape when the
    element count is a multiple of 128 -- the common case."""
    flat = a.reshape(-1)
    n = flat.size
    rows = max(_cdiv(n, LANES), 1)
    if n % LANES:
        # TODO(synk): rare unaligned tail -- this path materializes one padded
        # copy; applied identically to both members of the pair so padded
        # diffs are exactly zero.
        flat = jnp.pad(flat, (0, rows * LANES - n))
    return flat.reshape(rows, LANES)


def _as_2d(a):
    return a if a.ndim == 2 else a.reshape(1, -1)


@jax.jit
def my_loss(x, de1, s, de2, ed1, ed2):
    assert x.shape == de1.shape
    assert s.shape == de2.shape
    assert ed1.shape == ed2.shape

    n1, n2, n3 = x.size, s.size, ed1.size

    # ---- big pair: zero-copy lane-dense slabs, tiled over a 1-D grid --------
    xa = _to_rows(x)
    xb = _to_rows(de1)
    rows = xa.shape[0]

    num_tiles = _cdiv(rows, MAX_TILE_ROWS)
    if num_tiles == 1 and rows >= MIN_ROWS_FOR_SPLIT:
        num_tiles = 2                      # let v7x megacore use both TCs
    tile_rows = _round_up(_cdiv(rows, num_tiles), 8)
    num_tiles = _cdiv(rows, tile_rows)
    need_mask = (num_tiles * tile_rows != rows)

    # ---- small pairs: raw full-array blocks, zero wrapper preprocessing -----
    s2, d2 = _as_2d(s), _as_2d(de2)
    e1, e2 = _as_2d(ed1), _as_2d(ed2)

    kernel = functools.partial(
        _my_loss_kernel,
        tile_rows=tile_rows, valid_rows=rows, need_mask=need_mask,
        inv_n1=1.0 / n1, inv_n2=1.0 / n2, inv_n3=1.0 / n3)

    partials = pl.pallas_call(
        kernel,
        out_shape=jax.ShapeDtypeStruct((num_tiles * 8, LANES), jnp.float32),
        grid=(num_tiles,),
        in_specs=[
            pl.BlockSpec((tile_rows, LANES), lambda i: (i, 0)),
            pl.BlockSpec((tile_rows, LANES), lambda i: (i, 0)),
            # Small tensors: full-array blocks, same index every step
            # -> DMA'd once, kept resident in VMEM.
            pl.BlockSpec(s2.shape, lambda i: (0, 0)),
            pl.BlockSpec(d2.shape, lambda i: (0, 0)),
            pl.BlockSpec(e1.shape, lambda i: (0, 0)),
            pl.BlockSpec(e2.shape, lambda i: (0, 0)),
        ],
        out_specs=pl.BlockSpec((8, LANES), lambda i: (i, 0)),
        compiler_params=pltpu.CompilerParams(
            # Per-tile partials are independent -> shardable over both v7x TCs.
            dimension_semantics=("parallel",),
            # ~16 MiB double-buffered big-pair tiles + small refs + output.
            vmem_limit_bytes=32 * 1024 * 1024,
        ),
    )(xa, xb, s2, d2, e1, e2)

    # Tiny final reduction of the lane-dense partials (already in loss units).
    return jnp.sum(partials)


if __name__ == "__main__":
    key = jax.random.PRNGKey(0)
    k1, k2, k3, k4, k5, k6 = jax.random.split(key, 6)

    # Shapes consistent with the module's forward:
    #  x / de1  : autoencoder input & reconstruction, NCHW (2, 4, 16, 16)
    #  s / de2  : adjacency / structure matrix & reconstruction, (16, 16)
    #  ed1 / ed2: two graph embeddings, (2, 32)
    x = jax.random.normal(k1, (2, 4, 16, 16), dtype=jnp.float32)
    de1 = jax.random.normal(k2, (2, 4, 16, 16), dtype=jnp.float32)
    s = jax.random.normal(k3, (16, 16), dtype=jnp.float32)
    de2 = jax.random.normal(k4, (16, 16), dtype=jnp.float32)
    ed1 = jax.random.normal(k5, (2, 32), dtype=jnp.float32)
    ed2 = jax.random.normal(k6, (2, 32), dtype=jnp.float32)

    loss = jax.block_until_ready(my_loss(x, de1, s, de2, ed1, ed2))

    # Reference check (plain JAX) for sanity.
    ref = (jnp.mean((x - de1) ** 2)
           + jnp.mean((s - de2) ** 2)
           + jnp.mean((ed1 - ed2) ** 2))
    assert jnp.allclose(loss, ref, rtol=1e-5, atol=1e-5), (loss, ref)

    print("KERNEL_OK")
</pallas_src>

<mosaic_0001>
module attributes {stable_mosaic.version = 11 : i64} {
  func.func @_my_loss_kernel(%arg0: i32, %arg1: memref<16x128xf32, #tpu.memory_space<vmem>>, %arg2: memref<16x128xf32, #tpu.memory_space<vmem>>, %arg3: memref<16x16xf32, #tpu.memory_space<vmem>>, %arg4: memref<16x16xf32, #tpu.memory_space<vmem>>, %arg5: memref<2x32xf32, #tpu.memory_space<vmem>>, %arg6: memref<2x32xf32, #tpu.memory_space<vmem>>, %arg7: memref<8x128xf32, #tpu.memory_space<vmem>>) attributes {dimension_semantics = [#tpu.dimension_semantics<parallel>], iteration_bounds = array<i64: 1>, scalar_prefetch = 0 : i64, scratch_operands = 0 : i64, tpu.core_type = #tpu.core_type<tc>, window_params = [{transform_indices = @transform_0, window_bounds = array<i64: 16, 128>}, {transform_indices = @transform_1, window_bounds = array<i64: 16, 128>}, {pipeline_mode = #tpu.pipeline_mode<synchronous>, transform_indices = @transform_2, window_bounds = array<i64: 16, 16>}, {pipeline_mode = #tpu.pipeline_mode<synchronous>, transform_indices = @transform_3, window_bounds = array<i64: 16, 16>}, {pipeline_mode = #tpu.pipeline_mode<synchronous>, transform_indices = @transform_4, window_bounds = array<i64: 2, 32>}, {pipeline_mode = #tpu.pipeline_mode<synchronous>, transform_indices = @transform_5, window_bounds = array<i64: 2, 32>}, {transform_indices = @transform_6, window_bounds = array<i64: 8, 128>}]} {
    %c0 = arith.constant 0 : index
    %c0_0 = arith.constant 0 : index
    %0 = vector.load %arg1[%c0, %c0_0] : memref<16x128xf32, #tpu.memory_space<vmem>>, vector<16x128xf32>
    %c0_1 = arith.constant 0 : index
    %c0_2 = arith.constant 0 : index
    %1 = vector.load %arg2[%c0_1, %c0_2] : memref<16x128xf32, #tpu.memory_space<vmem>>, vector<16x128xf32>
    %2 = arith.subf %0, %1 : vector<16x128xf32>
    %3 = arith.mulf %2, %2 : vector<16x128xf32>
    %cst = arith.constant dense<0.000000e+00> : vector<128xf32>
    %4 = vector.multi_reduction <add>, %3, %cst [0] : vector<16x128xf32> to vector<128xf32>
    %5 = vector.shape_cast %4 : vector<128xf32> to vector<1x128xf32>
    %cst_3 = arith.constant 4.8828125E-4 : f32
    %6 = vector.broadcast %cst_3 : f32 to vector<1x128xf32>
    %7 = arith.mulf %5, %6 : vector<1x128xf32>
    %8 = tpu.iota {dimensions = array<i32: 0>} : vector<8x128xi32>
    %c0_i32 = arith.constant 0 : i32
    %9 = arith.cmpi eq, %arg0, %c0_i32 : i32
    %10 = arith.extui %9 : i1 to i32
    %c0_i32_4 = arith.constant 0 : i32
    %11 = arith.cmpi ne, %10, %c0_i32_4 : i32
    scf.if %11 {
      %c0_7 = arith.constant 0 : index
      %c0_8 = arith.constant 0 : index
      %15 = vector.load %arg3[%c0_7, %c0_8] : memref<16x16xf32, #tpu.memory_space<vmem>>, vector<16x16xf32>
      %c0_9 = arith.constant 0 : index
      %c0_10 = arith.constant 0 : index
      %16 = vector.load %arg4[%c0_9, %c0_10] : memref<16x16xf32, #tpu.memory_space<vmem>>, vector<16x16xf32>
      %17 = arith.subf %15, %16 : vector<16x16xf32>
      %c0_11 = arith.constant 0 : index
      %c0_12 = arith.constant 0 : index
      %18 = vector.load %arg5[%c0_11, %c0_12] : memref<2x32xf32, #tpu.memory_space<vmem>>, vector<2x32xf32>
      %c0_13 = arith.constant 0 : index
      %c0_14 = arith.constant 0 : index
      %19 = vector.load %arg6[%c0_13, %c0_14] : memref<2x32xf32, #tpu.memory_space<vmem>>, vector<2x32xf32>
      %20 = arith.subf %18, %19 : vector<2x32xf32>
      %21 = arith.mulf %17, %17 : vector<16x16xf32>
      %22 = vector.shape_cast %21 : vector<16x16xf32> to vector<1x16x16xf32>
      %cst_15 = arith.constant dense<0.000000e+00> : vector<1xf32>
      %23 = vector.multi_reduction <add>, %22, %cst_15 [1, 2] : vector<1x16x16xf32> to vector<1xf32>
      %24 = vector.shape_cast %23 : vector<1xf32> to vector<1x1x1xf32>
      %25 = vector.extract %24[0, 0, 0] : f32 from vector<1x1x1xf32>
      %cst_16 = arith.constant 3.906250e-03 : f32
      %26 = arith.mulf %25, %cst_16 : f32
      %27 = arith.mulf %20, %20 : vector<2x32xf32>
      %28 = vector.shape_cast %27 : vector<2x32xf32> to vector<1x2x32xf32>
      %cst_17 = arith.constant dense<0.000000e+00> : vector<1xf32>
      %29 = vector.multi_reduction <add>, %28, %cst_17 [1, 2] : vector<1x2x32xf32> to vector<1xf32>
      %30 = vector.shape_cast %29 : vector<1xf32> to vector<1x1x1xf32>
      %31 = vector.extract %30[0, 0, 0] : f32 from vector<1x1x1xf32>
      %cst_18 = arith.constant 1.562500e-02 : f32
      %32 = arith.mulf %31, %cst_18 : f32
      %33 = arith.addf %26, %32 : f32
      %34 = tpu.iota {dimensions = array<i32: 1>} : vector<1x128xi32>
      %c0_i32_19 = arith.constant 0 : i32
      %35 = vector.broadcast %c0_i32_19 : i32 to vector<1x128xi32>
      %36 = arith.cmpi eq, %34, %35 : vector<1x128xi32>
      %cst_20 = arith.constant 0.000000e+00 : f32
      %37 = vector.broadcast %33 : f32 to vector<1x128xf32>
      %38 = vector.broadcast %cst_20 : f32 to vector<1x128xf32>
      %39 = arith.select %36, %37, %38 : vector<1x128xi1>, vector<1x128xf32>
      %40 = arith.addf %7, %39 : vector<1x128xf32>
      %c0_i32_21 = arith.constant 0 : i32
      %41 = vector.broadcast %c0_i32_21 : i32 to vector<8x128xi32>
      %42 = arith.cmpi eq, %8, %41 : vector<8x128xi32>
      %cst_22 = arith.constant 0.000000e+00 : f32
      %43 = vector.shape_cast %40 : vector<1x128xf32> to vector<1x128xf32>
      %44 = vector.broadcast %43 : vector<1x128xf32> to vector<8x128xf32>
      %45 = vector.broadcast %cst_22 : f32 to vector<8x128xf32>
      %46 = arith.select %42, %44, %45 : vector<8x128xi1>, vector<8x128xf32>
      %c0_23 = arith.constant 0 : index
      %c0_24 = arith.constant 0 : index
      %47 = vector.load %arg7[%c0_23, %c0_24] : memref<8x128xf32, #tpu.memory_space<vmem>>, vector<8x128xf32>
      tpu.vector_store %arg7[%c0_23, %c0_24], %46 {strides = array<i32>} : memref<8x128xf32, #tpu.memory_space<vmem>>, vector<8x128xf32>,
    } else {
    }
    %c0_i32_5 = arith.constant 0 : i32
    %12 = arith.cmpi ne, %arg0, %c0_i32_5 : i32
    %13 = arith.extui %12 : i1 to i32
    %c0_i32_6 = arith.constant 0 : i32
    %14 = arith.cmpi ne, %13, %c0_i32_6 : i32
    scf.if %14 {
      %c0_i32_7 = arith.constant 0 : i32
      %15 = vector.broadcast %c0_i32_7 : i32 to vector<8x128xi32>
      %16 = arith.cmpi eq, %8, %15 : vector<8x128xi32>
      %cst_8 = arith.constant 0.000000e+00 : f32
      %17 = vector.shape_cast %7 : vector<1x128xf32> to vector<1x128xf32>
      %18 = vector.broadcast %17 : vector<1x128xf32> to vector<8x128xf32>
      %19 = vector.broadcast %cst_8 : f32 to vector<8x128xf32>
      %20 = arith.select %16, %18, %19 : vector<8x128xi1>, vector<8x128xf32>
      %c0_9 = arith.constant 0 : index
      %c0_10 = arith.constant 0 : index
      %21 = vector.load %arg7[%c0_9, %c0_10] : memref<8x128xf32, #tpu.memory_space<vmem>>, vector<8x128xf32>
      tpu.vector_store %arg7[%c0_9, %c0_10], %20 {strides = array<i32>} : memref<8x128xf32, #tpu.memory_space<vmem>>, vector<8x128xf32>,
    } else {
    }
    return
  }
  func.func @transform_0(%arg0: i32) -> (i32, i32) {
    %c0_i32 = arith.constant 0 : i32
    %c0_i32_0 = arith.constant 0 : i32
    return %arg0, %c0_i32 : i32, i32
  }
  func.func @transform_1(%arg0: i32) -> (i32, i32) {
    %c0_i32 = arith.constant 0 : i32
    %c0_i32_0 = arith.constant 0 : i32
    return %arg0, %c0_i32 : i32, i32
  }
  func.func @transform_2(%arg0: i32) -> (i32, i32) {
    %c0_i32 = arith.constant 0 : i32
    %c0_i32_0 = arith.constant 0 : i32
    %c0_i32_1 = arith.constant 0 : i32
    return %c0_i32, %c0_i32_0 : i32, i32
  }
  func.func @transform_3(%arg0: i32) -> (i32, i32) {
    %c0_i32 = arith.constant 0 : i32
    %c0_i32_0 = arith.constant 0 : i32
    %c0_i32_1 = arith.constant 0 : i32
    return %c0_i32, %c0_i32_0 : i32, i32
  }
  func.func @transform_4(%arg0: i32) -> (i32, i32) {
    %c0_i32 = arith.constant 0 : i32
    %c0_i32_0 = arith.constant 0 : i32
    %c0_i32_1 = arith.constant 0 : i32
    return %c0_i32, %c0_i32_0 : i32, i32
  }
  func.func @transform_5(%arg0: i32) -> (i32, i32) {
    %c0_i32 = arith.constant 0 : i32
    %c0_i32_0 = arith.constant 0 : i32
    %c0_i32_1 = arith.constant 0 : i32
    return %c0_i32, %c0_i32_0 : i32, i32
  }
  func.func @transform_6(%arg0: i32) -> (i32, i32) {
    %c0_i32 = arith.constant 0 : i32
    %c0_i32_0 = arith.constant 0 : i32
    return %arg0, %c0_i32 : i32, i32
  }
}

</mosaic_0001>

<llo_original>
// kernel: my_loss.1
$region0: #{my_loss.1}
  #allocation0 [shape = 'u32[]', space=smem, size = 0x4, offset = 0x4, fixed_abs, tag = 'smem constant byte address 0x4 - core index']
  #allocation1 [shape = 'u32[144,128]{1,0:T(1,128)}', space=vmem, size = 0x12000, scoped, tag = 'internal scratch']
  %s0 = inlined_call_operand.vmem [shape: f32[16,128], index: 0, kind: input, shape index: {}]
  %s1 = inlined_call_operand.vmem [shape: f32[16,128], index: 1, kind: input, shape index: {}]
  %s2 = inlined_call_operand.vmem [shape: f32[16,16], index: 2, kind: input, shape index: {}]
  %s3 = inlined_call_operand.vmem [shape: f32[16,16], index: 3, kind: input, shape index: {}]
  %s4 = inlined_call_operand.vmem [shape: f32[2,32], index: 4, kind: input, shape index: {}]
  %s5 = inlined_call_operand.vmem [shape: f32[2,32], index: 5, kind: input, shape index: {}]
  %s6 = inlined_call_operand.vmem [shape: f32[8,128], index: 6, kind: output, shape index: {}]
  %s7 = sld [smem:[#allocation0]]
  $region42: #{my_loss.1} parent=0
    _
  %s9 = ssub.s32 1, %s7
  %s10 = scalar_select 0, %s9, %s7
  // Predicated region
  $region2: #{my_loss.1} parent=0 // pred_check
    _
  $region3: #{my_loss.1} parent=0 // pred_check_branch
    %12 = sbr.rel (0) target = $region5
  $region4: #{my_loss.1} parent=0 // pred_region
    _
  $region5: #{my_loss.1} parent=0 // pred_fallthru
    _
  // Predicated region
  $region6: #{my_loss.1} parent=0 // pred_check
    _
  $region7: #{my_loss.1} parent=0 // pred_check_branch
    %14 = sbr.rel (0) target = $region9
  $region8: #{my_loss.1} parent=0 // pred_region
    _
  $region9: #{my_loss.1} parent=0 // pred_fallthru
    _
  // Predicated region
  $region10: #{my_loss.1} parent=0 // pred_check
    _
  $region11: #{my_loss.1} parent=0 // pred_check_branch
    %16 = sbr.rel (0) target = $region13
  $region12: #{my_loss.1} parent=0 // pred_region
    _
  $region13: #{my_loss.1} parent=0 // pred_fallthru
    _
  // Predicated region
  $region14: #{my_loss.1} parent=0 // pred_check
    _
  $region15: #{my_loss.1} parent=0 // pred_check_branch
    %18 = sbr.rel (0) target = $region17
  $region16: #{my_loss.1} parent=0 // pred_region
    _
  $region17: #{my_loss.1} parent=0 // pred_fallthru
    _
  // Predicated region
  $region18: #{my_loss.1} parent=0 // pred_check
    _
  $region19: #{my_loss.1} parent=0 // pred_check_branch
    %20 = sbr.rel (0) target = $region21
  $region20: #{my_loss.1} parent=0 // pred_region
    _
  $region21: #{my_loss.1} parent=0 // pred_fallthru
    _
  // Predicated region
  $region22: #{my_loss.1} parent=0 // pred_check
    _
  $region23: #{my_loss.1} parent=0 // pred_check_branch
    %22 = sbr.rel (0) target = $region25
  $region24: #{my_loss.1} parent=0 // pred_region
    _
  $region25: #{my_loss.1} parent=0 // pred_fallthru
    _
  %v23 = vld [vmem:[%s0] sm:$0xff]
  %v24 = vld [vmem:[%s0 + $0x8] sm:$0xff]
  %v25 = vld [vmem:[%s1] sm:$0xff]
  %v26 = vld [vmem:[%s1 + $0x8] sm:$0xff]
  %v27 = vsub.f32 %v23, %v25
  %v28 = vsub.f32 %v24, %v26
  %v29 = vmul.f32 %v27, %v27
  %v30 = vmul.f32 %v28, %v28
  %v31 = vadd.f32 %v29, %v30
  %v32 = vrot.slane %v31, 4
  %v33 = vadd.f32 %v31, %v32
  %v34 = vrot.slane %v33, 2
  %v35 = vadd.f32 %v33, %v34
  %v36 = vrot.slane %v35, 1
  %v37 = vadd.f32 %v35, %v36
  %v38 = vmul.f32 %v37, 0.00048828125
  %v39 = vlaneseq
  %v40 = vshrl.u32 %v39, 7
  %p41 = scmp.eq.s32.totalorder 0, 0
  // Predicated region
  $region26: #{my_loss.1} parent=0 // pred_check
    %p42 = pneg %p41
  $region27: #{my_loss.1} parent=0 // pred_check_branch
    %44 = sbr.rel (%p42) target = $region29
  $region28: #{my_loss.1} parent=0 // pred_region
    %v45 = vld [vmem:[%s2] sm:$0xff]
    %v46 = vld [vmem:[%s2 + $0x8] sm:$0xff]
    %v47 = vld [vmem:[%s3] sm:$0xff]
    %v48 = vld [vmem:[%s3 + $0x8] sm:$0xff]
    %v49 = vsub.f32 %v45, %v47
    %v50 = vsub.f32 %v46, %v48
    %v51 = vld [vmem:[%s4] sm:$0x3]
    %v52 = vld [vmem:[%s5] sm:$0x3]
    %v53 = vsub.f32 %v51, %v52
    %v54 = vmul.f32 %v49, %v49
    %v55 = vmul.f32 %v50, %v50
    %vm56 = vcmask 130048
    %v57 = vsel %vm56, %v54, 0.0
    %v58 = vsel %vm56, %v55, 0.0
    %v59 = vadd.f32 %v57, %v58
    %60 = vadd.xlane.f32.xlu0 %v59
    %v61 = vpop.xlane.xlu0 %60
    %v62 = vrot.slane %v61, 4
    %v63 = vadd.f32 %v61, %v62
    %v64 = vrot.slane %v63, 2
    %v65 = vadd.f32 %v63, %v64
    %v66 = vrot.slane %v65, 1
    %v67 = vadd.f32 %v65, %v66
    %s68 = vtos %v67
    %s69 = smul.f32 %s68, 0.00390625
    %v70 = vmul.f32 %v53, %v53
    %vm71 = vcmask 254976
    %v72 = vsel %vm71, %v70, 0.0
    %73 = vadd.xlane.f32.xlu0 %v72
    %v74 = vpop.xlane.xlu0 %73
    %v75 = vrot.slane %v74, 4
    %v76 = vadd.f32 %v74, %v75
    %v77 = vrot.slane %v76, 2
    %v78 = vadd.f32 %v76, %v77
    %v79 = vrot.slane %v78, 1
    %v80 = vadd.f32 %v78, %v79
    %s81 = vtos %v80
    %s82 = smul.f32 %s81, 0.015625
    %s83 = sadd.f32 %s69, %s82
    %v84 = vlaneseq
    %v85 = vand.u32 %v84, 127
    %vm86 = vcmp.eq.s32.totalorder %v85, 0
    %v87 = vstv %s83
    %v88 = vsel %vm86, %v87, 0.0
    %v89 = vadd.f32 %v38, %v88
    %vm90 = vcmp.eq.s32.totalorder %v40, 0
    %v91 = vsel %vm90, %v89, 0.0
    %92 = vst [vmem:[%s6] sm:$0xff] %v91
  $region29: #{my_loss.1} parent=0 // pred_fallthru
    _
  %p93 = scmp.ne.s32.totalorder 0, 0
  // Predicated region
  $region30: #{my_loss.1} parent=0 // pred_check
    %p94 = pneg %p93
  $region31: #{my_loss.1} parent=0 // pred_check_branch
    %96 = sbr.rel (%p94) target = $region33
  $region32: #{my_loss.1} parent=0 // pred_region
    %vm97 = vcmp.eq.s32.totalorder %v40, 0
    %v98 = vsel %vm97, %v38, 0.0
    %99 = vst [vmem:[%s6] sm:$0xff] %v98
  $region33: #{my_loss.1} parent=0 // pred_fallthru
    _
  // Predicated region
  $region34: #{my_loss.1} parent=0 // pred_check
    _
  $region35: #{my_loss.1} parent=0 // pred_check_branch
    %101 = sbr.rel (0) target = $region37
  $region36: #{my_loss.1} parent=0 // pred_region
    _
  $region37: #{my_loss.1} parent=0 // pred_fallthru
    _
  // Predicated region
  $region38: #{my_loss.1} parent=0 // pred_check
    _
  $region39: #{my_loss.1} parent=0 // pred_check_branch
    %103 = sbr.rel (0) target = $region41
  $region40: #{my_loss.1} parent=0 // pred_region
    _
  $region41: #{my_loss.1} parent=0 // pred_fallthru
    _

</llo_original>
